<compile_context>
chip_gen: v5e
topology: v5e:2x2
jax: 0.10.0
libtpu: 0.0.40
codegen_flags: <defaults>
</compile_context>

<pallas_src>
import jax
import jax.numpy as jnp
from jax.experimental import pallas as pl
from jax.experimental.pallas import tpu as pltpu

PAD = 2   # max padding across branches (kernel_size=5 -> pad 2)
KT = 5    # number of packed taps (offsets 0..4 in the padded frame)


def _inception_kernel(x_ref, w_ref, s_ref, b_ref, o_ref):
    # x_ref : (B, Cin, L)        batch-block of inputs, channels-first (NCL)
    # w_ref : (Cout, KT*Cin)     packed per-tap weights (no BN scale folded)
    # s_ref : (Cout, 1)          BN scale  (gamma / sqrt(var + eps)), f32
    # b_ref : (Cout, 1)          BN shift  (beta - mean * scale),     f32
    # o_ref : (B, Cout, L)       output block (NCL)
    B, Cin, L = x_ref.shape

    # In-VMEM cast to the compute dtype (no wrapper-side HBM pass).
    x = x_ref[...].astype(w_ref.dtype)                       # (B, Cin, L)

    # Tap-stacked activation (B, KT*Cin, L): 5 shifted copies with zero halo.
    # tap t reads x[..., l + t - PAD]; shifts are lane-axis slices (XLU) plus
    # at most PAD columns of zeros.
    parts = []
    for t in range(KT):
        d = t - PAD
        if d == 0:
            parts.append(x)
        elif d > 0:
            z = jnp.zeros((B, Cin, d), x.dtype)
            parts.append(jnp.concatenate([x[:, :, d:], z], axis=2))
        else:
            z = jnp.zeros((B, Cin, -d), x.dtype)
            parts.append(jnp.concatenate([z, x[:, :, :L + d]], axis=2))
    xs = jnp.concatenate(parts, axis=1)                       # (B, KT*Cin, L)

    w = w_ref[...]                                            # (Cout, KT*Cin)
    scale = s_ref[...]                                        # (Cout, 1) f32
    bias = b_ref[...]                                         # (Cout, 1) f32

    # One full-depth MXU matmul per sample (static unroll over the small batch
    # block), f32 accumulation, f32 epilogue (BN affine + ReLU), dense store.
    for b in range(B):
        acc = jnp.dot(w, xs[b], preferred_element_type=jnp.float32)  # (Cout, L)
        o_ref[b] = jnp.maximum(acc * scale + bias, 0.0).astype(o_ref.dtype)


def pack_inception_params(w1, w3, w5, wp, gamma, beta, run_mean, run_var,
                          eps=1e-5):
    """Pack the four branches into one (Cout, KT*Cin) matrix + BN scale/shift.

    w1, wp: (Cout/4, Cin, 1)  torch Conv1d weight layout (O, I, k)
    w3    : (Cout/4, Cin, 3)
    w5    : (Cout/4, Cin, 5)
    gamma/beta/run_mean/run_var: (Cout,) concatenated in branch order bn1..bn4.

    Returns (W_packed (Cout, KT*Cin) f32, scale (Cout,1) f32, bias (Cout,1) f32).
    BN scale is *not* folded into the weights (applied in the f32 epilogue).
    """
    C4, Cin, _ = w1.shape
    Cout = 4 * C4

    W = jnp.zeros((KT, Cout, Cin), jnp.float32)
    # branch1 (1x1, pad 0): single tap at the centre offset.
    W = W.at[PAD, 0 * C4:1 * C4, :].set(w1[:, :, 0].astype(jnp.float32))
    # branch2 (3x1, pad 1): torch tap j reads l + j - 1 -> offset j + 1.
    for j in range(3):
        W = W.at[j + 1, 1 * C4:2 * C4, :].set(w3[:, :, j].astype(jnp.float32))
    # branch3 (5x1, pad 2): torch tap j reads l + j - 2 -> offset j.
    for j in range(5):
        W = W.at[j, 2 * C4:3 * C4, :].set(w5[:, :, j].astype(jnp.float32))
    # branch4 (conv_pool 1x1): single centre tap.
    W = W.at[PAD, 3 * C4:4 * C4, :].set(wp[:, :, 0].astype(jnp.float32))

    # (KT, Cout, Cin) -> (Cout, KT*Cin) with column index t*Cin + c, matching
    # the tap-stacked activation layout built inside the kernel.
    W_big = jnp.transpose(W, (1, 0, 2)).reshape(Cout, KT * Cin)

    scale = (gamma / jnp.sqrt(run_var + eps)).astype(jnp.float32)
    bias = (beta - run_mean * scale).astype(jnp.float32)
    return W_big, scale.reshape(Cout, 1), bias.reshape(Cout, 1)


def _choose_batch_block(N, Cin, Cout, L, in_bytes, cmp_bytes, out_bytes,
                        budget_bytes=12 << 20):
    """Largest batch block that fits a conservative VMEM budget and keeps the
    grid length >= 2 (so both v7x TensorCores get work)."""
    K = KT * Cin

    def footprint(B):
        return (2 * B * Cin * L * in_bytes        # double-buffered input blocks
                + 2 * B * Cout * L * out_bytes    # double-buffered output blocks
                + B * K * L * cmp_bytes           # tap-stacked activations
                + Cout * L * 4                    # f32 accumulator tile
                + Cout * (K * cmp_bytes + 8))     # weights + scale + bias

    if N <= 1:
        return 1
    best = 1
    for d in range(1, N // 2 + 1):                # grid length N // d >= 2
        if N % d == 0 and footprint(d) <= budget_bytes:
            best = max(best, d)
    return best


def inception_block_1d(x_ncl, w_packed, scale_col, bias_col, *,
                       compute_dtype=jnp.bfloat16, out_dtype=None,
                       batch_block=None):
    """x_ncl: (N, Cin, L).  Returns (N, Cout, L) matching the PyTorch module."""
    N, Cin, L = x_ncl.shape
    Cout, K = w_packed.shape
    assert K == KT * Cin, (K, KT * Cin)
    out_dtype = x_ncl.dtype if out_dtype is None else out_dtype

    if batch_block is None:
        batch_block = _choose_batch_block(
            N, Cin, Cout, L,
            jnp.dtype(x_ncl.dtype).itemsize,
            jnp.dtype(compute_dtype).itemsize,
            jnp.dtype(out_dtype).itemsize)
    B = batch_block
    assert N % B == 0, (N, B)

    # Weights are tiny: cast once host-side; activations are NOT cast here
    # (they are cast in VMEM inside the kernel).
    w_c = w_packed.astype(compute_dtype)

    return pl.pallas_call(
        _inception_kernel,
        out_shape=jax.ShapeDtypeStruct((N, Cout, L), out_dtype),
        grid_spec=pltpu.PrefetchScalarGridSpec(
            num_scalar_prefetch=0,
            grid=(N // B,),
            in_specs=[
                pl.BlockSpec((B, Cin, L), lambda n: (n, 0, 0)),
                pl.BlockSpec((Cout, K), lambda n: (0, 0)),
                pl.BlockSpec((Cout, 1), lambda n: (0, 0)),
                pl.BlockSpec((Cout, 1), lambda n: (0, 0)),
            ],
            out_specs=pl.BlockSpec((B, Cout, L), lambda n: (n, 0, 0)),
        ),
        compiler_params=pltpu.CompilerParams(
            dimension_semantics=("parallel",)),
    )(x_ncl, w_c, scale_col, bias_col)


def _reference(x, w1, w3, w5, wp, gamma, beta, run_mean, run_var, eps=1e-5):
    """Pure-JAX reference with module semantics (NCL, per-channel BN, ReLU)."""
    def conv(x, w, pad):  # w in torch layout (O, I, k)
        return jax.lax.conv_general_dilated(
            x, w, window_strides=(1,), padding=[(pad, pad)],
            dimension_numbers=("NCH", "OIH", "NCH"))

    cat = jnp.concatenate([conv(x, w1, 0), conv(x, w3, 1),
                           conv(x, w5, 2), conv(x, wp, 0)], axis=1)
    scale = gamma / jnp.sqrt(run_var + eps)
    bias = beta - run_mean * scale
    return jnp.maximum(cat * scale[None, :, None] + bias[None, :, None], 0.0)


if __name__ == "__main__":
    # Small shapes consistent with the module: Conv1d input is (N, C_in, L).
    N, Cin, L = 2, 4, 16
    Cout = 32
    C4 = Cout // 4
    eps = 1e-5

    key = jax.random.PRNGKey(0)
    ks = jax.random.split(key, 9)

    x = jax.random.normal(ks[0], (N, Cin, L), dtype=jnp.float32)

    # Conv weights in torch layout (C_out/4, C_in, k); bias=False per the spec.
    w1 = 0.2 * jax.random.normal(ks[1], (C4, Cin, 1), dtype=jnp.float32)
    w3 = 0.2 * jax.random.normal(ks[2], (C4, Cin, 3), dtype=jnp.float32)
    w5 = 0.2 * jax.random.normal(ks[3], (C4, Cin, 5), dtype=jnp.float32)
    wp = 0.2 * jax.random.normal(ks[4], (C4, Cin, 1), dtype=jnp.float32)

    # BatchNorm (inference) params, concatenated in branch order [bn1..bn4].
    gamma = 1.0 + 0.1 * jax.random.normal(ks[5], (Cout,), dtype=jnp.float32)
    beta = 0.1 * jax.random.normal(ks[6], (Cout,), dtype=jnp.float32)
    run_mean = 0.1 * jax.random.normal(ks[7], (Cout,), dtype=jnp.float32)
    run_var = jnp.abs(jax.random.normal(ks[8], (Cout,), dtype=jnp.float32)) + 0.5

    W_packed, scale_col, bias_col = pack_inception_params(
        w1, w3, w5, wp, gamma, beta, run_mean, run_var, eps)

    ref = _reference(x, w1, w3, w5, wp, gamma, beta, run_mean, run_var, eps)

    # Strict f32 path.
    out_f32 = jax.block_until_ready(
        inception_block_1d(x, W_packed, scale_col, bias_col,
                           compute_dtype=jnp.float32))
    assert out_f32.shape == (N, Cout, L), out_f32.shape
    assert jnp.allclose(out_f32, ref, atol=1e-4, rtol=1e-4), float(
        jnp.max(jnp.abs(out_f32 - ref)))

    # Default bf16 MXU path (f32 accumulation, f32 BN+ReLU epilogue).
    out_bf16 = jax.block_until_ready(
        inception_block_1d(x, W_packed, scale_col, bias_col))
    assert out_bf16.shape == (N, Cout, L), out_bf16.shape
    assert jnp.allclose(out_bf16, ref, atol=0.25, rtol=0.1), float(
        jnp.max(jnp.abs(out_bf16 - ref)))

    print("KERNEL_OK")
</pallas_src>

<mosaic_0001>
module attributes {stable_mosaic.version = 11 : i64} {
  func.func @_inception_kernel(%arg0: i32, %arg1: memref<1x4x16xf32, #tpu.memory_space<vmem>>, %arg2: memref<32x20xf32, #tpu.memory_space<vmem>>, %arg3: memref<32x1xf32, #tpu.memory_space<vmem>>, %arg4: memref<32x1xf32, #tpu.memory_space<vmem>>, %arg5: memref<1x32x16xf32, #tpu.memory_space<vmem>>) attributes {dimension_semantics = [#tpu.dimension_semantics<parallel>], iteration_bounds = array<i64: 2>, scalar_prefetch = 0 : i64, scratch_operands = 0 : i64, tpu.core_type = #tpu.core_type<tc>, window_params = [{transform_indices = @transform_0, window_bounds = array<i64: 1, 4, 16>}, {pipeline_mode = #tpu.pipeline_mode<synchronous>, transform_indices = @transform_1, window_bounds = array<i64: 32, 20>}, {pipeline_mode = #tpu.pipeline_mode<synchronous>, transform_indices = @transform_2, window_bounds = array<i64: 32, 1>}, {pipeline_mode = #tpu.pipeline_mode<synchronous>, transform_indices = @transform_3, window_bounds = array<i64: 32, 1>}, {transform_indices = @transform_4, window_bounds = array<i64: 1, 32, 16>}]} {
    %c0 = arith.constant 0 : index
    %c0_0 = arith.constant 0 : index
    %c0_1 = arith.constant 0 : index
    %0 = vector.load %arg1[%c0, %c0_0, %c0_1] : memref<1x4x16xf32, #tpu.memory_space<vmem>>, vector<1x4x16xf32>
    %cst = arith.constant 0.000000e+00 : f32
    %1 = vector.broadcast %cst : f32 to vector<1x4x2xf32>
    %2 = vector.extract_strided_slice %0 {offsets = [0, 0, 0], sizes = [1, 4, 14], strides = [1, 1, 1]} : vector<1x4x16xf32> to vector<1x4x14xf32>
    %3 = tpu.concatenate %1, %2 in 2 : vector<1x4x2xf32>, vector<1x4x14xf32> -> vector<1x4x16xf32>
    %cst_2 = arith.constant 0.000000e+00 : f32
    %4 = vector.broadcast %cst_2 : f32 to vector<1x4x1xf32>
    %5 = vector.extract_strided_slice %0 {offsets = [0, 0, 0], sizes = [1, 4, 15], strides = [1, 1, 1]} : vector<1x4x16xf32> to vector<1x4x15xf32>
    %6 = tpu.concatenate %4, %5 in 2 : vector<1x4x1xf32>, vector<1x4x15xf32> -> vector<1x4x16xf32>
    %cst_3 = arith.constant 0.000000e+00 : f32
    %7 = vector.broadcast %cst_3 : f32 to vector<1x4x1xf32>
    %8 = vector.extract_strided_slice %0 {offsets = [0, 0, 1], sizes = [1, 4, 15], strides = [1, 1, 1]} : vector<1x4x16xf32> to vector<1x4x15xf32>
    %9 = tpu.concatenate %8, %7 in 2 : vector<1x4x15xf32>, vector<1x4x1xf32> -> vector<1x4x16xf32>
    %cst_4 = arith.constant 0.000000e+00 : f32
    %10 = vector.broadcast %cst_4 : f32 to vector<1x4x2xf32>
    %11 = vector.extract_strided_slice %0 {offsets = [0, 0, 2], sizes = [1, 4, 14], strides = [1, 1, 1]} : vector<1x4x16xf32> to vector<1x4x14xf32>
    %12 = tpu.concatenate %11, %10 in 2 : vector<1x4x14xf32>, vector<1x4x2xf32> -> vector<1x4x16xf32>
    %13 = tpu.concatenate %3, %6, %0, %9, %12 in 1 : vector<1x4x16xf32>, vector<1x4x16xf32>, vector<1x4x16xf32>, vector<1x4x16xf32>, vector<1x4x16xf32> -> vector<1x20x16xf32>
    %c0_5 = arith.constant 0 : index
    %c0_6 = arith.constant 0 : index
    %14 = vector.load %arg2[%c0_5, %c0_6] : memref<32x20xf32, #tpu.memory_space<vmem>>, vector<32x20xf32>
    %c0_7 = arith.constant 0 : index
    %c0_8 = arith.constant 0 : index
    %15 = vector.load %arg3[%c0_7, %c0_8] : memref<32x1xf32, #tpu.memory_space<vmem>>, vector<32x1xf32>
    %c0_9 = arith.constant 0 : index
    %c0_10 = arith.constant 0 : index
    %16 = vector.load %arg4[%c0_9, %c0_10] : memref<32x1xf32, #tpu.memory_space<vmem>>, vector<32x1xf32>
    %17 = vector.shape_cast %13 : vector<1x20x16xf32> to vector<20x16xf32>
    %cst_11 = arith.constant dense<0.000000e+00> : vector<32x16xf32>
    %18 = tpu.matmul %14, %17, %cst_11 {dimension_numbers = #tpu.dot_dimension_numbers<[1], [0], [0], [1], [0, 0, 1, 1], [], []>} : vector<32x20xf32>, vector<20x16xf32>, vector<32x16xf32> -> vector<32x16xf32>
    %19 = vector.broadcast %15 : vector<32x1xf32> to vector<32x16xf32>
    %20 = arith.mulf %18, %19 : vector<32x16xf32>
    %21 = vector.broadcast %16 : vector<32x1xf32> to vector<32x16xf32>
    %22 = arith.addf %20, %21 : vector<32x16xf32>
    %cst_12 = arith.constant 0.000000e+00 : f32
    %23 = vector.broadcast %cst_12 : f32 to vector<32x16xf32>
    %24 = arith.maximumf %22, %23 : vector<32x16xf32>
    %c0_13 = arith.constant 0 : index
    %c0_14 = arith.constant 0 : index
    %c0_15 = arith.constant 0 : index
    %25 = vector.load %arg5[%c0_13, %c0_14, %c0_15] : memref<1x32x16xf32, #tpu.memory_space<vmem>>, vector<1x32x16xf32>
    %26 = vector.shape_cast %25 : vector<1x32x16xf32> to vector<32x16xf32>
    %27 = vector.shape_cast %24 : vector<32x16xf32> to vector<1x32x16xf32>
    tpu.vector_store %arg5[%c0_13, %c0_14, %c0_15], %27 {strides = array<i32>} : memref<1x32x16xf32, #tpu.memory_space<vmem>>, vector<1x32x16xf32>,
    return
  }
  func.func @transform_0(%arg0: i32) -> (i32, i32, i32) {
    %c0_i32 = arith.constant 0 : i32
    %c0_i32_0 = arith.constant 0 : i32
    %c0_i32_1 = arith.constant 0 : i32
    return %arg0, %c0_i32, %c0_i32_0 : i32, i32, i32
  }
  func.func @transform_1(%arg0: i32) -> (i32, i32) {
    %c0_i32 = arith.constant 0 : i32
    %c0_i32_0 = arith.constant 0 : i32
    %c0_i32_1 = arith.constant 0 : i32
    return %c0_i32, %c0_i32_0 : i32, i32
  }
  func.func @transform_2(%arg0: i32) -> (i32, i32) {
    %c0_i32 = arith.constant 0 : i32
    %c0_i32_0 = arith.constant 0 : i32
    %c0_i32_1 = arith.constant 0 : i32
    return %c0_i32, %c0_i32_0 : i32, i32
  }
  func.func @transform_3(%arg0: i32) -> (i32, i32) {
    %c0_i32 = arith.constant 0 : i32
    %c0_i32_0 = arith.constant 0 : i32
    %c0_i32_1 = arith.constant 0 : i32
    return %c0_i32, %c0_i32_0 : i32, i32
  }
  func.func @transform_4(%arg0: i32) -> (i32, i32, i32) {
    %c0_i32 = arith.constant 0 : i32
    %c0_i32_0 = arith.constant 0 : i32
    %c0_i32_1 = arith.constant 0 : i32
    return %arg0, %c0_i32, %c0_i32_0 : i32, i32, i32
  }
}

</mosaic_0001>

<llo_original>
// kernel: tpu_custom_call.1
$region0: #{tpu_custom_call.1}
  #allocation0 [shape = 'u32[]', space=smem, size = 0x4, offset = 0x4, fixed_abs, tag = 'smem constant byte address 0x4 - core index']
  #allocation1 [shape = 'u32[72,128]{1,0:T(1,128)}', space=vmem, size = 0x9000, scoped, tag = 'internal scratch']
  %s0 = inlined_call_operand.vmem [shape: f32[2,4,16], index: 0, kind: input, shape index: {}]
  %s1 = inlined_call_operand.vmem [shape: f32[32,20], index: 1, kind: input, shape index: {}]
  %s2 = inlined_call_operand.vmem [shape: f32[32,1], index: 2, kind: input, shape index: {}]
  %s3 = inlined_call_operand.vmem [shape: f32[32,1], index: 3, kind: input, shape index: {}]
  %s4 = inlined_call_operand.vmem [shape: f32[2,32,16], index: 4, kind: output, shape index: {}]
  %s5 = sld [smem:[#allocation0]]
  $region49: #{tpu_custom_call.1} parent=0
    _
  %s7 = ssub.s32 1, %s5
  %s8 = scalar_select 0, %s7, %s5
  loop: start=0, step=1, limit=4
  $region2: #{tpu_custom_call.1} parent=0 // loop_pre_header
    _
  $region3: #{tpu_custom_call.1} parent=0 // loop_header
    %s10 = sphi 0, %s14
    %p11 = scmp.ge.s32.totalorder %s10, 4
    %s20 = sphi 0, %s22
    %s23 = sphi 0, %s20
    %s24 = sphi 0, %s23
    %s40 = sphi 0, %s24
    %s44 = sphi 0, %s44
    %s46 = sphi 0, %s44
    %s47 = sphi 0, %s46
    %s61 = sphi 0, %s47
    %s65 = sphi 0, %s65
    %s67 = sphi 0, %s65
    %s68 = sphi 0, %s67
    %s82 = sphi 0, %s68
    %s86 = sphi 0, %s86
    %s88 = sphi 0, %s86
    %s89 = sphi 0, %s88
    %s103 = sphi 0, %s89
    %s109 = sphi 0, %s111
    %s112 = sphi 0, %s109
    %s113 = sphi 0, %s112
    %s129 = sphi 0, %s113
  $region4: #{tpu_custom_call.1} parent=0 // loop_header_branch
    %13 = sbr.rel (%p11) target = $region8
  $region5: #{tpu_custom_call.1} parent=0 // loop_body
    %s15 = ssub.s32 %s10, 1
    %s16 = ssub.s32 %s10, 2
    %s17 = sadd.s32 %s10, 1
    %s18 = ssub.s32 %s10, %s17
    %p19 = scmp.eq.s32.totalorder %s18, 0
    %s21 = sadd.s32 %s20, 1
    %s22 = scalar_select %p19, %s20, %s21
    %p25 = pneg %p19
    %p26 = scmp.eq.s32.totalorder %s10, 1
    %p27 = por %p25, %p26
    %p28 = scmp.ne.s32.totalorder %s20, %s23
    %p29 = scmp.eq.s32.totalorder %s10, 0
    %p30 = por %p28, %p29
    %p31 = scmp.ne.s32.totalorder %s20, %s23
    %p32 = scmp.eq.s32.totalorder %s15, 1
    %p33 = por %p31, %p32
    %p34 = scmp.ne.s32.totalorder %s23, %s24
    %p35 = scmp.eq.s32.totalorder %s15, 0
    %p36 = por %p34, %p35
    %p37 = scmp.ne.s32.totalorder %s23, %s24
    %p38 = scmp.eq.s32.totalorder %s16, 1
    %p39 = por %p37, %p38
    %p41 = scmp.ne.s32.totalorder %s24, %s40
    %p42 = scmp.eq.s32.totalorder %s16, 0
    %p43 = por %p41, %p42
    %s45 = sadd.s32 %s44, 1
    %p48 = scmp.eq.s32.totalorder %s10, 1
    %p49 = scmp.ne.s32.totalorder %s44, %s46
    %p50 = scmp.eq.s32.totalorder %s10, 0
    %p51 = por %p49, %p50
    %p52 = scmp.ne.s32.totalorder %s44, %s46
    %p53 = scmp.eq.s32.totalorder %s15, 1
    %p54 = por %p52, %p53
    %p55 = scmp.ne.s32.totalorder %s46, %s47
    %p56 = scmp.eq.s32.totalorder %s15, 0
    %p57 = por %p55, %p56
    %p58 = scmp.ne.s32.totalorder %s46, %s47
    %p59 = scmp.eq.s32.totalorder %s16, 1
    %p60 = por %p58, %p59
    %p62 = scmp.ne.s32.totalorder %s47, %s61
    %p63 = scmp.eq.s32.totalorder %s16, 0
    %p64 = por %p62, %p63
    %s66 = sadd.s32 %s65, 1
    %p69 = scmp.eq.s32.totalorder %s10, 1
    %p70 = scmp.ne.s32.totalorder %s65, %s67
    %p71 = scmp.eq.s32.totalorder %s10, 0
    %p72 = por %p70, %p71
    %p73 = scmp.ne.s32.totalorder %s65, %s67
    %p74 = scmp.eq.s32.totalorder %s15, 1
    %p75 = por %p73, %p74
    %p76 = scmp.ne.s32.totalorder %s67, %s68
    %p77 = scmp.eq.s32.totalorder %s15, 0
    %p78 = por %p76, %p77
    %p79 = scmp.ne.s32.totalorder %s67, %s68
    %p80 = scmp.eq.s32.totalorder %s16, 1
    %p81 = por %p79, %p80
    %p83 = scmp.ne.s32.totalorder %s68, %s82
    %p84 = scmp.eq.s32.totalorder %s16, 0
    %p85 = por %p83, %p84
    %s87 = sadd.s32 %s86, 1
    %p90 = scmp.eq.s32.totalorder %s10, 1
    %p91 = scmp.ne.s32.totalorder %s86, %s88
    %p92 = scmp.eq.s32.totalorder %s10, 0
    %p93 = por %p91, %p92
    %p94 = scmp.ne.s32.totalorder %s86, %s88
    %p95 = scmp.eq.s32.totalorder %s15, 1
    %p96 = por %p94, %p95
    %p97 = scmp.ne.s32.totalorder %s88, %s89
    %p98 = scmp.eq.s32.totalorder %s15, 0
    %p99 = por %p97, %p98
    %p100 = scmp.ne.s32.totalorder %s88, %s89
    %p101 = scmp.eq.s32.totalorder %s16, 1
    %p102 = por %p100, %p101
    %p104 = scmp.ne.s32.totalorder %s89, %s103
    %p105 = scmp.eq.s32.totalorder %s16, 0
    %p106 = por %p104, %p105
    %s107 = ssub.s32 %s10, %s17
    %p108 = scmp.eq.s32.totalorder %s107, 0
    %s110 = sadd.s32 %s109, 1
    %s111 = scalar_select %p108, %s109, %s110
    %p114 = pneg %p108
    %p115 = scmp.eq.s32.totalorder %s10, 1
    %p116 = por %p114, %p115
    %p117 = scmp.ne.s32.totalorder %s109, %s112
    %p118 = scmp.eq.s32.totalorder %s10, 0
    %p119 = por %p117, %p118
    %p120 = scmp.ne.s32.totalorder %s109, %s112
    %p121 = scmp.eq.s32.totalorder %s15, 1
    %p122 = por %p120, %p121
    %p123 = scmp.ne.s32.totalorder %s112, %s113
    %p124 = scmp.eq.s32.totalorder %s15, 0
    %p125 = por %p123, %p124
    %p126 = scmp.ne.s32.totalorder %s112, %s113
    %p127 = scmp.eq.s32.totalorder %s16, 1
    %p128 = por %p126, %p127
    %p130 = scmp.ne.s32.totalorder %s113, %s129
    %p131 = scmp.eq.s32.totalorder %s16, 0
    %p132 = por %p130, %p131
    %p133 = scmp.le.s32.totalorder 1, %s10
    %p134 = scmp.lt.s32.totalorder %s10, 3
    %p135 = pnand %p133, %p134
    %p136 = pneg %p135
    // Predicated region
    $region9: #{tpu_custom_call.1} parent=5 // pred_check
      _
    $region10: #{tpu_custom_call.1} parent=5 // pred_check_branch
      %138 = sbr.rel (%p135) target = $region12
    $region11: #{tpu_custom_call.1} parent=5 // pred_region
      %s139 = ssub.s32 %s10, 1
      // Predicated region
      $region13: #{tpu_custom_call.1} parent=11 // pred_check
        %p140 = pneg %p57
      $region14: #{tpu_custom_call.1} parent=11 // pred_check_branch
        %142 = sbr.rel (%p140) target = $region16
      $region15: #{tpu_custom_call.1} parent=11 // pred_region
        _
      $region16: #{tpu_custom_call.1} parent=11 // pred_fallthru
        _
      // Predicated region
      $region17: #{tpu_custom_call.1} parent=11 // pred_check
        %p143 = pneg %p78
      $region18: #{tpu_custom_call.1} parent=11 // pred_check_branch
        %145 = sbr.rel (%p143) target = $region20
      $region19: #{tpu_custom_call.1} parent=11 // pred_region
        _
      $region20: #{tpu_custom_call.1} parent=11 // pred_fallthru
        _
      // Predicated region
      $region21: #{tpu_custom_call.1} parent=11 // pred_check
        %p146 = pneg %p99
      $region22: #{tpu_custom_call.1} parent=11 // pred_check_branch
        %148 = sbr.rel (%p146) target = $region24
      $region23: #{tpu_custom_call.1} parent=11 // pred_region
        _
      $region24: #{tpu_custom_call.1} parent=11 // pred_fallthru
        _
    $region12: #{tpu_custom_call.1} parent=5 // pred_fallthru
      _
    %p149 = scmp.lt.s32.totalorder %s10, 2
    // Predicated region
    $region25: #{tpu_custom_call.1} parent=5 // pred_check
      %p150 = pneg %p149
    $region26: #{tpu_custom_call.1} parent=5 // pred_check_branch
      %152 = sbr.rel (%p150) target = $region28
    $region27: #{tpu_custom_call.1} parent=5 // pred_region
      // Predicated region
      $region29: #{tpu_custom_call.1} parent=27 // pred_check
        %p153 = pneg %p30
      $region30: #{tpu_custom_call.1} parent=27 // pred_check_branch
        %155 = sbr.rel (%p153) target = $region32
      $region31: #{tpu_custom_call.1} parent=27 // pred_region
        %p156 = scmp.lt.s32.totalorder %s10, 1
        %s157 = scalar_select %p156, %s10, 1
        %s158 = smul.addr %s157, 4
        %s159 = scalar_lea.vmem %s0, %s158
      $region32: #{tpu_custom_call.1} parent=27 // pred_fallthru
        _
    $region28: #{tpu_custom_call.1} parent=5 // pred_fallthru
      _
    %p160 = scmp.le.s32.totalorder 1, %s10
    %p161 = scmp.lt.s32.totalorder %s10, 3
    %p162 = pnand %p160, %p161
    %p163 = pneg %p162
    // Predicated region
    $region33: #{tpu_custom_call.1} parent=5 // pred_check
      _
    $region34: #{tpu_custom_call.1} parent=5 // pred_check_branch
      %165 = sbr.rel (%p162) target = $region36
    $region35: #{tpu_custom_call.1} parent=5 // pred_region
      %s166 = ssub.s32 %s10, 1
      %p167 = scmp.lt.s32.totalorder %s15, 1
      %s168 = scalar_select %p167, %s15, 1
      %s169 = smul.addr %s168, 4
      %s170 = scalar_lea.vmem %s0, %s169
      %p171 = pneg %p36
      %p172 = pneg %p33
      %p173 = pneg %p57
      %p174 = pneg %p54
      %p175 = pneg %p78
      %p176 = pneg %p75
      %p177 = pneg %p99
      %p178 = pneg %p96
      %p179 = pneg %p125
      %p180 = pneg %p122
      %p181 = scmp.lt.s32.totalorder %s15, 1
      %s182 = scalar_select %p181, %s15, 1
      %s183 = smul.addr %s182, 4
      %s184 = smul.addr %s183, 8
      %s185 = scalar_lea.vmem %s4, %s184
      %p186 = scmp.lt.s32.totalorder %s15, 1
      %s187 = scalar_select %p186, %s15, 1
      %s188 = smul.addr %s187, 4
      %s189 = scalar_lea.vmem %s0, %s188
      %p190 = scmp.lt.s32.totalorder %s15, 1
      %s191 = scalar_select %p190, %s15, 1
      %s192 = smul.addr %s191, 4
      %s193 = smul.addr %s192, 8
      %s194 = scalar_lea.vmem %s4, %s193
      %v195 = vld [vmem:[%s189] sm:$0xf]
      %197 = vrot.lane.b32.xlu0 %v195, 2
      %v198 = vpop.permute.xlu0 %197
      %vm200 = vcmask 15360
      %v201 = vsel %vm200, 0.0, %v198
      %202 = vrot.lane.b32.xlu0 %v195, 1
      %v203 = vpop.permute.xlu0 %202
      %vm205 = vcmask 7168
      %v206 = vsel %vm205, 0.0, %v203
      %207 = vrot.lane.b32.xlu0 %v195, 127
      %v208 = vpop.permute.xlu0 %207
      %vm210 = vcmask 121856
      %v211 = vsel %vm210, %v208, 0.0
      %212 = vrot.lane.b32.xlu0 %v195, 126
      %v213 = vpop.permute.xlu0 %212
      %vm215 = vcmask 113664
      %v216 = vsel %vm215, %v213, 0.0
      %v218 = vrot.slane %v206, 4
      %v221 = vrot.slane %v211, 4
      %vm223 = vcmask 1043456
      %v224 = vsel %vm223, %v201, %v218
      %v225 = vsel %vm223, %v195, %v221
      %v226 = vld [vmem:[%s1] sm:$0xff]
      %v227 = vld [vmem:[%s1 + $0x8] sm:$0xff]
      %v228 = vld [vmem:[%s1 + $0x10] sm:$0xff]
      %v229 = vld [vmem:[%s1 + $0x18] sm:$0xff]
      %v230 = vld [vmem:[%s2] sm:$0xff]
      %v231 = vld [vmem:[%s2 + $0x8] sm:$0xff]
      %v232 = vld [vmem:[%s2 + $0x10] sm:$0xff]
      %v233 = vld [vmem:[%s2 + $0x18] sm:$0xff]
      %v234 = vld [vmem:[%s3] sm:$0xff]
      %v235 = vld [vmem:[%s3 + $0x8] sm:$0xff]
      %v236 = vld [vmem:[%s3 + $0x10] sm:$0xff]
      %v237 = vld [vmem:[%s3 + $0x18] sm:$0xff]
      %vm238 = vcmask 162816
      %v240 = vsel %vm238, %v226, 0
      %v243 = vsel %vm238, %v227, 0
      %v246 = vsel %vm238, %v228, 0
      %v249 = vsel %vm238, %v229, 0
      %v252 = vsel %vm223, %v216, 0
      %254 = vmatpush.msra.mxu0 0.0
      %255 = vmatpush.msra.mxu0 0.0
      %256 = vmatpush.msra.mxu0 0.0
      %257 = vmatpush.msra.mxu0 0.0
      %258 = vmatpush.msra.mxu0 0.0
      %259 = vmatpush.msra.mxu0 0.0
      %260 = vmatpush.msra.mxu0 0.0
      %261 = vmatpush.msra.mxu0 0.0
      %262 = vmatpush.msra.mxu0 0.0
      %263 = vmatpush.msra.mxu0 0.0
      %264 = vmatpush.msra.mxu0 0.0
      %265 = vmatpush.msra.mxu0 0.0
      %266 = vmatpush.msra.mxu0 0.0
      %267 = vmatpush.msra.mxu0 %v252
      %268 = vmatpush.msra.mxu0 %v225
      %269 = vmatpush.msra.mxu0 %v224
      %270 = vmatmul.f32.gmra.mxu0 %v240
      %v271 = vpop.f32.mrf.mxu0
      %v272 = vadd.f32 0.0, %v271
      %273 = vmatmul.f32.gmra.mxu0 %v243
      %v274 = vpop.f32.mrf.mxu0
      %v275 = vadd.f32 0.0, %v274
      %276 = vmatmul.f32.gmra.mxu0 %v246
      %v277 = vpop.f32.mrf.mxu0
      %v278 = vadd.f32 0.0, %v277
      %279 = vmatmul.f32.gmra.mxu0 %v249
      %v280 = vpop.f32.mrf.mxu0
      %v281 = vadd.f32 0.0, %v280
      %282 = vdwg.mxu0
      %284 = vset.pattern.permute.xlu0 0
      %285 = vperm.xlu0 %284, %v230
      %v286 = vpop.permute.xlu0 %285
      %289 = vset.pattern.permute.xlu0 0
      %290 = vperm.xlu0 %289, %v231
      %v291 = vpop.permute.xlu0 %290
      %294 = vset.pattern.permute.xlu0 0
      %295 = vperm.xlu0 %294, %v232
      %v296 = vpop.permute.xlu0 %295
      %299 = vset.pattern.permute.xlu0 0
      %300 = vperm.xlu0 %299, %v233
      %v301 = vpop.permute.xlu0 %300
      %v303 = vmul.f32 %v272, %v286
      %v304 = vmul.f32 %v275, %v291
      %v305 = vmul.f32 %v278, %v296
      %v306 = vmul.f32 %v281, %v301
      %308 = vset.pattern.permute.xlu0 0
      %309 = vperm.xlu0 %308, %v234
      %v310 = vpop.permute.xlu0 %309
      %313 = vset.pattern.permute.xlu0 0
      %314 = vperm.xlu0 %313, %v235
      %v315 = vpop.permute.xlu0 %314
      %318 = vset.pattern.permute.xlu0 0
      %319 = vperm.xlu0 %318, %v236
      %v320 = vpop.permute.xlu0 %319
      %323 = vset.pattern.permute.xlu0 0
      %324 = vperm.xlu0 %323, %v237
      %v325 = vpop.permute.xlu0 %324
      %v327 = vadd.f32 %v303, %v310
      %v328 = vadd.f32 %v304, %v315
      %v329 = vadd.f32 %v305, %v320
      %v330 = vadd.f32 %v306, %v325
      %v331 = vmax.f32 %v327, 0.0
      %v332 = vmax.f32 %v328, 0.0
      %v333 = vmax.f32 %v329, 0.0
      %v334 = vmax.f32 %v330, 0.0
      %vm335 = vcmask 130048
      %336 = vst.msk [vmem:[%s194] sm:$0xff] %vm335, %v331
      %337 = vst.msk [vmem:[%s194 + $0x8] sm:$0xff] %vm335, %v332
      %338 = vst.msk [vmem:[%s194 + $0x10] sm:$0xff] %vm335, %v333
      %339 = vst.msk [vmem:[%s194 + $0x18] sm:$0xff] %vm335, %v334
      %p340 = scmp.lt.s32.totalorder %s15, 1
      %s341 = scalar_select %p340, %s15, 1
      %s342 = smul.addr %s341, 4
      %s343 = smul.addr %s342, 8
      %s344 = scalar_lea.vmem %s4, %s343
      // Predicated region
      $region37: #{tpu_custom_call.1} parent=35 // pred_check
        %p345 = pneg %p122
      $region38: #{tpu_custom_call.1} parent=35 // pred_check_branch
        %347 = sbr.rel (%p345) target = $region40
      $region39: #{tpu_custom_call.1} parent=35 // pred_region
        _
      $region40: #{tpu_custom_call.1} parent=35 // pred_fallthru
        _
    $region36: #{tpu_custom_call.1} parent=5 // pred_fallthru
      _
    %p348 = scmp.le.s32.totalorder 2, %s10
    // Predicated region
    $region41: #{tpu_custom_call.1} parent=5 // pred_check
      %p349 = pneg %p348
    $region42: #{tpu_custom_call.1} parent=5 // pred_check_branch
      %351 = sbr.rel (%p349) target = $region44
    $region43: #{tpu_custom_call.1} parent=5 // pred_region
      %s352 = ssub.s32 %s10, 2
      // Predicated region
      $region45: #{tpu_custom_call.1} parent=43 // pred_check
        %p353 = pneg %p128
      $region46: #{tpu_custom_call.1} parent=43 // pred_check_branch
        %355 = sbr.rel (%p353) target = $region48
      $region47: #{tpu_custom_call.1} parent=43 // pred_region
        %p356 = scmp.lt.s32.totalorder %s16, 1
        %s357 = scalar_select %p356, %s16, 1
        %s358 = smul.addr %s357, 4
        %s359 = smul.addr %s358, 8
        %s360 = scalar_lea.vmem %s4, %s359
      $region48: #{tpu_custom_call.1} parent=43 // pred_fallthru
        _
    $region44: #{tpu_custom_call.1} parent=5 // pred_fallthru
      _
  $region6: #{tpu_custom_call.1} parent=0 // loop_footer
    %s14 = sadd.s32 1, %s10
  $region7: #{tpu_custom_call.1} parent=0 // loop_footer_branch
    %9 = sbr.rel target = $region3
  $region8: #{tpu_custom_call.1} parent=0 // loop_exit
    _

</llo_original>
